<compile_context>
chip_gen: v5e
topology: v5e:2x2
jax: 0.10.0
libtpu: 0.0.40
codegen_flags: <defaults>
</compile_context>

<pallas_src>
import functools

import jax
import jax.numpy as jnp
from jax.experimental import pallas as pl
from jax.experimental.pallas import tpu as pltpu


ATTN_ALPHA = 0.2        # LeakyReLU slope inside the attention-score computation
MASK_VALUE = -9e15      # pyGAT "zero_vec" value for non-edges


def _leaky_relu(x, alpha):
    return jnp.where(x > 0, x, alpha * x)


def _attention(e, adj_bias, wh):
    """Masked row-softmax attention + aggregation for one (N, N) score matrix."""
    e = _leaky_relu(e, ATTN_ALPHA) + adj_bias          # additive mask (0 / -9e15)
    m = jnp.max(e, axis=-1, keepdims=True)
    p = jnp.exp(e - m)
    denom = jnp.sum(p, axis=-1, keepdims=True)
    attn = p * pl.reciprocal(denom, approx=True)       # EUP reciprocal, frees VALU
    return jnp.dot(attn, wh, preferred_element_type=jnp.float32)


def gat_subnet_kernel(x_ref, w_all_ref, a_cat_ref, w_out_ref, a_out_ref, adjb_ref,
                      o_ref, *, heads, hidden, out_alpha):
    """Full GATSubNet forward for one batch element (all nodes resident in VMEM)."""
    x = x_ref[0]                                        # (N, C)
    adj_bias = adjb_ref[...]                            # (N, N) additive mask

    # ---- stage 1: all attention heads, fused ------------------------------
    # one matmul for every head's Wh
    wh_all = jnp.dot(x, w_all_ref[...], preferred_element_type=jnp.float32)     # (N, H*F)
    # one matmul for every head's src/dst scores: cols [0:H]=src, [H:2H]=dst
    scores = jnp.dot(wh_all, a_cat_ref[...], preferred_element_type=jnp.float32)  # (N, 2H)
    # single XLU transpose for all heads' destination scores (kept out of loop)
    dst_rows = jnp.transpose(scores[:, heads:2 * heads], (1, 0))                 # (H, N)

    head_outs = []
    for h in range(heads):                              # static unroll, H is small
        e = scores[:, h:h + 1] + dst_rows[h:h + 1, :]   # (N, N) broadcast add
        wh_h = wh_all[:, h * hidden:(h + 1) * hidden]   # (N, F)
        head_outs.append(_attention(e, adj_bias, wh_h))
    h_cat = jnp.concatenate(head_outs, axis=-1)         # (N, H*F)  (stays in VMEM)
    h_cat = _leaky_relu(h_cat, out_alpha)               # module-level act after concat

    # ---- stage 2: output GAT layer ----------------------------------------
    wh2 = jnp.dot(h_cat, w_out_ref[...], preferred_element_type=jnp.float32)    # (N, F_out)
    sc2 = jnp.dot(wh2, a_out_ref[...], preferred_element_type=jnp.float32)      # (N, 2)
    e2 = sc2[:, 0:1] + jnp.transpose(sc2[:, 1:2], (1, 0))                       # (N, N)
    out = _attention(e2, adj_bias, wh2)                 # (N, F_out)
    out = _leaky_relu(out, out_alpha)                   # final module-level act
    o_ref[0] = out.astype(o_ref.dtype)


def gat_subnet_forward(x, graph, params, alpha):
    """Mirrors GATSubNet.forward with a single fused pallas_call.

    x: [B, N, C], graph: [N, N] -> [B, N, gat_output]
    """
    B, N = x.shape[0], x.shape[1]
    x = x.reshape(B, N, -1)                             # x.view(B, N, -1)
    C = x.shape[-1]

    heads = len(params["heads"])
    hidden = params["heads"][0][0].shape[1]
    HF = heads * hidden
    w_out, a_src_out, a_dst_out = params["out"]
    F_out = w_out.shape[1]

    # ---- pack parameters (cheap, done on the XLA side, once per call) -----
    w_all = jnp.concatenate([w for (w, _, _) in params["heads"]], axis=1)        # (C, H*F)
    a_cat = jnp.zeros((HF, 2 * heads), jnp.float32)
    for h, (_, a_s, a_d) in enumerate(params["heads"]):
        a_cat = a_cat.at[h * hidden:(h + 1) * hidden, h].set(a_s[:, 0])
        a_cat = a_cat.at[h * hidden:(h + 1) * hidden, heads + h].set(a_d[:, 0])
    a_out_cat = jnp.concatenate([a_src_out, a_dst_out], axis=1)                  # (F_out, 2)

    # Precomputed additive adjacency bias (0 for edges, -9e15 for non-edges).
    # Note: matches the reference exactly whenever each node has >=1 neighbor.
    adj_bias = jnp.where(graph > 0, 0.0, MASK_VALUE).astype(jnp.float32)         # (N, N)

    kernel = functools.partial(gat_subnet_kernel, heads=heads, hidden=hidden,
                               out_alpha=alpha)

    # Advisory cost estimate for XLA's scheduler.
    flops_per_b = (
        2 * N * C * HF                              # x @ W_all
        + 2 * N * HF * 2 * heads                    # packed score projection
        + heads * (2 * N * N * hidden + 8 * N * N)  # per-head attn matmul + elementwise
        + 2 * N * HF * F_out                        # h_cat @ W_out
        + 2 * N * F_out * 2                         # output score projection
        + 2 * N * N * F_out + 8 * N * N             # output attn matmul + elementwise
    )
    cost = pl.CostEstimate(
        flops=B * flops_per_b,
        transcendentals=B * (heads + 1) * N * N,
        bytes_accessed=4 * (B * N * C + C * HF + HF * 2 * heads + HF * F_out
                            + F_out * 2 + N * N + B * N * F_out),
    )

    return pl.pallas_call(
        kernel,
        out_shape=jax.ShapeDtypeStruct((B, N, F_out), x.dtype),
        grid=(B,),
        in_specs=[
            pl.BlockSpec((1, N, C), lambda b: (b, 0, 0)),      # x (per-batch tile)
            pl.BlockSpec((C, HF), lambda b: (0, 0)),           # stacked head weights
            pl.BlockSpec((HF, 2 * heads), lambda b: (0, 0)),   # packed a_src/a_dst
            pl.BlockSpec((HF, F_out), lambda b: (0, 0)),       # output-layer W
            pl.BlockSpec((F_out, 2), lambda b: (0, 0)),        # output-layer a_src|a_dst
            pl.BlockSpec((N, N), lambda b: (0, 0)),            # adjacency bias
        ],
        out_specs=pl.BlockSpec((1, N, F_out), lambda b: (b, 0, 0)),
        compiler_params=pltpu.CompilerParams(
            dimension_semantics=("parallel",)),                # batch -> both TCs on v7x
        cost_estimate=cost,
    )(x, w_all, a_cat, w_out, a_out_cat, adj_bias)


def init_params(key, history_length, gat_hidden, gat_output, gat_heads):
    """Deterministic Xavier-uniform-ish init matching the module's parameter shapes."""
    params = {"heads": [], "out": None}

    def xavier(k, shape):
        fan_in, fan_out = shape[0], shape[1]
        lim = jnp.sqrt(6.0 / (fan_in + fan_out))
        return jax.random.uniform(k, shape, jnp.float32, -lim, lim)

    keys = jax.random.split(key, 3 * gat_heads + 3)
    for h in range(gat_heads):
        w = xavier(keys[3 * h + 0], (history_length, gat_hidden))
        a_src = xavier(keys[3 * h + 1], (gat_hidden, 1))
        a_dst = xavier(keys[3 * h + 2], (gat_hidden, 1))
        params["heads"].append((w, a_src, a_dst))
    w = xavier(keys[-3], (gat_hidden * gat_heads, gat_output))
    a_src = xavier(keys[-2], (gat_output, 1))
    a_dst = xavier(keys[-1], (gat_output, 1))
    params["out"] = (w, a_src, a_dst)
    return params


if __name__ == "__main__":
    # Small, forward-consistent shapes.
    B, N = 2, 16
    history_length, gat_hidden, gat_output, gat_heads = 8, 16, 8, 2
    alpha = 0.3       # slope of the module-level nn.LeakyReLU
    dropout = 0.0     # inference: dropout is identity

    key = jax.random.PRNGKey(0)
    k_x, k_p = jax.random.split(key)

    x = jax.random.normal(k_x, (B, N, history_length), dtype=jnp.float32)

    # Deterministic adjacency: ring graph + self loops (every node has edges).
    idx = jnp.arange(N)
    graph = (
        jnp.eye(N, dtype=jnp.float32)
        + jnp.zeros((N, N), jnp.float32).at[idx, (idx + 1) % N].set(1.0)
        + jnp.zeros((N, N), jnp.float32).at[idx, (idx - 1) % N].set(1.0)
    )

    params = init_params(k_p, history_length, gat_hidden, gat_output, gat_heads)

    out = gat_subnet_forward(x, graph, params, alpha)
    out = jax.block_until_ready(out)
    assert out.shape == (B, N, gat_output), out.shape
    print("KERNEL_OK")
</pallas_src>

<mosaic_0001>
module attributes {stable_mosaic.version = 11 : i64} {
  func.func @gat_subnet_kernel(%arg0: i32, %arg1: memref<1x16x8xf32, #tpu.memory_space<vmem>>, %arg2: memref<8x32xf32, #tpu.memory_space<vmem>>, %arg3: memref<32x4xf32, #tpu.memory_space<vmem>>, %arg4: memref<32x8xf32, #tpu.memory_space<vmem>>, %arg5: memref<8x2xf32, #tpu.memory_space<vmem>>, %arg6: memref<16x16xf32, #tpu.memory_space<vmem>>, %arg7: memref<1x16x8xf32, #tpu.memory_space<vmem>>) attributes {dimension_semantics = [#tpu.dimension_semantics<parallel>], iteration_bounds = array<i64: 2>, scalar_prefetch = 0 : i64, scratch_operands = 0 : i64, tpu.core_type = #tpu.core_type<tc>, window_params = [{transform_indices = @transform_0, window_bounds = array<i64: 1, 16, 8>}, {pipeline_mode = #tpu.pipeline_mode<synchronous>, transform_indices = @transform_1, window_bounds = array<i64: 8, 32>}, {pipeline_mode = #tpu.pipeline_mode<synchronous>, transform_indices = @transform_2, window_bounds = array<i64: 32, 4>}, {pipeline_mode = #tpu.pipeline_mode<synchronous>, transform_indices = @transform_3, window_bounds = array<i64: 32, 8>}, {pipeline_mode = #tpu.pipeline_mode<synchronous>, transform_indices = @transform_4, window_bounds = array<i64: 8, 2>}, {pipeline_mode = #tpu.pipeline_mode<synchronous>, transform_indices = @transform_5, window_bounds = array<i64: 16, 16>}, {transform_indices = @transform_6, window_bounds = array<i64: 1, 16, 8>}]} {
    %c0 = arith.constant 0 : index
    %c0_0 = arith.constant 0 : index
    %c0_1 = arith.constant 0 : index
    %0 = vector.load %arg1[%c0, %c0_0, %c0_1] : memref<1x16x8xf32, #tpu.memory_space<vmem>>, vector<1x16x8xf32>
    %1 = vector.shape_cast %0 : vector<1x16x8xf32> to vector<16x8xf32>
    %c0_2 = arith.constant 0 : index
    %c0_3 = arith.constant 0 : index
    %2 = vector.load %arg6[%c0_2, %c0_3] : memref<16x16xf32, #tpu.memory_space<vmem>>, vector<16x16xf32>
    %c0_4 = arith.constant 0 : index
    %c0_5 = arith.constant 0 : index
    %3 = vector.load %arg2[%c0_4, %c0_5] : memref<8x32xf32, #tpu.memory_space<vmem>>, vector<8x32xf32>
    %cst = arith.constant dense<0.000000e+00> : vector<16x32xf32>
    %4 = tpu.matmul %1, %3, %cst {dimension_numbers = #tpu.dot_dimension_numbers<[1], [0], [0], [1], [0, 0, 1, 1], [], []>} : vector<16x8xf32>, vector<8x32xf32>, vector<16x32xf32> -> vector<16x32xf32>
    %c0_6 = arith.constant 0 : index
    %c0_7 = arith.constant 0 : index
    %5 = vector.load %arg3[%c0_6, %c0_7] : memref<32x4xf32, #tpu.memory_space<vmem>>, vector<32x4xf32>
    %cst_8 = arith.constant dense<0.000000e+00> : vector<16x4xf32>
    %6 = tpu.matmul %4, %5, %cst_8 {dimension_numbers = #tpu.dot_dimension_numbers<[1], [0], [0], [1], [0, 0, 1, 1], [], []>} : vector<16x32xf32>, vector<32x4xf32>, vector<16x4xf32> -> vector<16x4xf32>
    %7 = vector.extract_strided_slice %6 {offsets = [0, 2], sizes = [16, 2], strides = [1, 1]} : vector<16x4xf32> to vector<16x2xf32>
    %8 = tpu.transpose %7, [1, 0] : vector<16x2xf32> -> vector<2x16xf32>
    %9 = vector.extract_strided_slice %6 {offsets = [0, 0], sizes = [16, 1], strides = [1, 1]} : vector<16x4xf32> to vector<16x1xf32>
    %10 = vector.extract_strided_slice %8 {offsets = [0, 0], sizes = [1, 16], strides = [1, 1]} : vector<2x16xf32> to vector<1x16xf32>
    %11 = vector.broadcast %9 : vector<16x1xf32> to vector<16x16xf32>
    %12 = vector.broadcast %10 : vector<1x16xf32> to vector<16x16xf32>
    %13 = arith.addf %11, %12 : vector<16x16xf32>
    %14 = vector.extract_strided_slice %4 {offsets = [0, 0], sizes = [16, 16], strides = [1, 1]} : vector<16x32xf32> to vector<16x16xf32>
    %cst_9 = arith.constant 0.000000e+00 : f32
    %15 = vector.broadcast %cst_9 : f32 to vector<16x16xf32>
    %16 = arith.cmpf ogt, %13, %15 : vector<16x16xf32>
    %cst_10 = arith.constant 2.000000e-01 : f32
    %17 = vector.broadcast %cst_10 : f32 to vector<16x16xf32>
    %18 = arith.mulf %17, %13 : vector<16x16xf32>
    %19 = arith.select %16, %13, %18 : vector<16x16xi1>, vector<16x16xf32>
    %20 = arith.addf %19, %2 : vector<16x16xf32>
    %cst_11 = arith.constant dense<0xFF800000> : vector<16xf32>
    %21 = vector.multi_reduction <maximumf>, %20, %cst_11 [1] : vector<16x16xf32> to vector<16xf32>
    %22 = vector.shape_cast %21 : vector<16xf32> to vector<16x1xf32>
    %23 = vector.broadcast %22 : vector<16x1xf32> to vector<16x16xf32>
    %24 = arith.subf %20, %23 : vector<16x16xf32>
    %25 = math.exp %24 : vector<16x16xf32>
    %cst_12 = arith.constant dense<0.000000e+00> : vector<16xf32>
    %26 = vector.multi_reduction <add>, %25, %cst_12 [1] : vector<16x16xf32> to vector<16xf32>
    %27 = vector.shape_cast %26 : vector<16xf32> to vector<16x1xf32>
    %28 = tpu.reciprocal %27 {approx = true} : vector<16x1xf32> -> vector<16x1xf32>
    %29 = vector.broadcast %28 : vector<16x1xf32> to vector<16x16xf32>
    %30 = arith.mulf %25, %29 : vector<16x16xf32>
    %cst_13 = arith.constant dense<0.000000e+00> : vector<16x16xf32>
    %31 = tpu.matmul %30, %14, %cst_13 {dimension_numbers = #tpu.dot_dimension_numbers<[1], [0], [0], [1], [0, 0, 1, 1], [], []>} : vector<16x16xf32>, vector<16x16xf32>, vector<16x16xf32> -> vector<16x16xf32>
    %32 = vector.extract_strided_slice %6 {offsets = [0, 1], sizes = [16, 1], strides = [1, 1]} : vector<16x4xf32> to vector<16x1xf32>
    %33 = vector.extract_strided_slice %8 {offsets = [1, 0], sizes = [1, 16], strides = [1, 1]} : vector<2x16xf32> to vector<1x16xf32>
    %34 = vector.broadcast %32 : vector<16x1xf32> to vector<16x16xf32>
    %35 = vector.broadcast %33 : vector<1x16xf32> to vector<16x16xf32>
    %36 = arith.addf %34, %35 : vector<16x16xf32>
    %37 = vector.extract_strided_slice %4 {offsets = [0, 16], sizes = [16, 16], strides = [1, 1]} : vector<16x32xf32> to vector<16x16xf32>
    %cst_14 = arith.constant 0.000000e+00 : f32
    %38 = vector.broadcast %cst_14 : f32 to vector<16x16xf32>
    %39 = arith.cmpf ogt, %36, %38 : vector<16x16xf32>
    %cst_15 = arith.constant 2.000000e-01 : f32
    %40 = vector.broadcast %cst_15 : f32 to vector<16x16xf32>
    %41 = arith.mulf %40, %36 : vector<16x16xf32>
    %42 = arith.select %39, %36, %41 : vector<16x16xi1>, vector<16x16xf32>
    %43 = arith.addf %42, %2 : vector<16x16xf32>
    %cst_16 = arith.constant dense<0xFF800000> : vector<16xf32>
    %44 = vector.multi_reduction <maximumf>, %43, %cst_16 [1] : vector<16x16xf32> to vector<16xf32>
    %45 = vector.shape_cast %44 : vector<16xf32> to vector<16x1xf32>
    %46 = vector.broadcast %45 : vector<16x1xf32> to vector<16x16xf32>
    %47 = arith.subf %43, %46 : vector<16x16xf32>
    %48 = math.exp %47 : vector<16x16xf32>
    %cst_17 = arith.constant dense<0.000000e+00> : vector<16xf32>
    %49 = vector.multi_reduction <add>, %48, %cst_17 [1] : vector<16x16xf32> to vector<16xf32>
    %50 = vector.shape_cast %49 : vector<16xf32> to vector<16x1xf32>
    %51 = tpu.reciprocal %50 {approx = true} : vector<16x1xf32> -> vector<16x1xf32>
    %52 = vector.broadcast %51 : vector<16x1xf32> to vector<16x16xf32>
    %53 = arith.mulf %48, %52 : vector<16x16xf32>
    %cst_18 = arith.constant dense<0.000000e+00> : vector<16x16xf32>
    %54 = tpu.matmul %53, %37, %cst_18 {dimension_numbers = #tpu.dot_dimension_numbers<[1], [0], [0], [1], [0, 0, 1, 1], [], []>} : vector<16x16xf32>, vector<16x16xf32>, vector<16x16xf32> -> vector<16x16xf32>
    %55 = tpu.concatenate %31, %54 in 1 : vector<16x16xf32>, vector<16x16xf32> -> vector<16x32xf32>
    %cst_19 = arith.constant 0.000000e+00 : f32
    %56 = vector.broadcast %cst_19 : f32 to vector<16x32xf32>
    %57 = arith.cmpf ogt, %55, %56 : vector<16x32xf32>
    %cst_20 = arith.constant 3.000000e-01 : f32
    %58 = vector.broadcast %cst_20 : f32 to vector<16x32xf32>
    %59 = arith.mulf %58, %55 : vector<16x32xf32>
    %60 = arith.select %57, %55, %59 : vector<16x32xi1>, vector<16x32xf32>
    %c0_21 = arith.constant 0 : index
    %c0_22 = arith.constant 0 : index
    %61 = vector.load %arg4[%c0_21, %c0_22] : memref<32x8xf32, #tpu.memory_space<vmem>>, vector<32x8xf32>
    %cst_23 = arith.constant dense<0.000000e+00> : vector<16x8xf32>
    %62 = tpu.matmul %60, %61, %cst_23 {dimension_numbers = #tpu.dot_dimension_numbers<[1], [0], [0], [1], [0, 0, 1, 1], [], []>} : vector<16x32xf32>, vector<32x8xf32>, vector<16x8xf32> -> vector<16x8xf32>
    %c0_24 = arith.constant 0 : index
    %c0_25 = arith.constant 0 : index
    %63 = vector.load %arg5[%c0_24, %c0_25] : memref<8x2xf32, #tpu.memory_space<vmem>>, vector<8x2xf32>
    %cst_26 = arith.constant dense<0.000000e+00> : vector<16x2xf32>
    %64 = tpu.matmul %62, %63, %cst_26 {dimension_numbers = #tpu.dot_dimension_numbers<[1], [0], [0], [1], [0, 0, 1, 1], [], []>} : vector<16x8xf32>, vector<8x2xf32>, vector<16x2xf32> -> vector<16x2xf32>
    %65 = vector.extract_strided_slice %64 {offsets = [0, 0], sizes = [16, 1], strides = [1, 1]} : vector<16x2xf32> to vector<16x1xf32>
    %66 = vector.extract_strided_slice %64 {offsets = [0, 1], sizes = [16, 1], strides = [1, 1]} : vector<16x2xf32> to vector<16x1xf32>
    %67 = tpu.transpose %66, [1, 0] : vector<16x1xf32> -> vector<1x16xf32>
    %68 = vector.broadcast %65 : vector<16x1xf32> to vector<16x16xf32>
    %69 = vector.broadcast %67 : vector<1x16xf32> to vector<16x16xf32>
    %70 = arith.addf %68, %69 : vector<16x16xf32>
    %cst_27 = arith.constant 0.000000e+00 : f32
    %71 = vector.broadcast %cst_27 : f32 to vector<16x16xf32>
    %72 = arith.cmpf ogt, %70, %71 : vector<16x16xf32>
    %cst_28 = arith.constant 2.000000e-01 : f32
    %73 = vector.broadcast %cst_28 : f32 to vector<16x16xf32>
    %74 = arith.mulf %73, %70 : vector<16x16xf32>
    %75 = arith.select %72, %70, %74 : vector<16x16xi1>, vector<16x16xf32>
    %76 = arith.addf %75, %2 : vector<16x16xf32>
    %cst_29 = arith.constant dense<0xFF800000> : vector<16xf32>
    %77 = vector.multi_reduction <maximumf>, %76, %cst_29 [1] : vector<16x16xf32> to vector<16xf32>
    %78 = vector.shape_cast %77 : vector<16xf32> to vector<16x1xf32>
    %79 = vector.broadcast %78 : vector<16x1xf32> to vector<16x16xf32>
    %80 = arith.subf %76, %79 : vector<16x16xf32>
    %81 = math.exp %80 : vector<16x16xf32>
    %cst_30 = arith.constant dense<0.000000e+00> : vector<16xf32>
    %82 = vector.multi_reduction <add>, %81, %cst_30 [1] : vector<16x16xf32> to vector<16xf32>
    %83 = vector.shape_cast %82 : vector<16xf32> to vector<16x1xf32>
    %84 = tpu.reciprocal %83 {approx = true} : vector<16x1xf32> -> vector<16x1xf32>
    %85 = vector.broadcast %84 : vector<16x1xf32> to vector<16x16xf32>
    %86 = arith.mulf %81, %85 : vector<16x16xf32>
    %cst_31 = arith.constant dense<0.000000e+00> : vector<16x8xf32>
    %87 = tpu.matmul %86, %62, %cst_31 {dimension_numbers = #tpu.dot_dimension_numbers<[1], [0], [0], [1], [0, 0, 1, 1], [], []>} : vector<16x16xf32>, vector<16x8xf32>, vector<16x8xf32> -> vector<16x8xf32>
    %cst_32 = arith.constant 0.000000e+00 : f32
    %88 = vector.broadcast %cst_32 : f32 to vector<16x8xf32>
    %89 = arith.cmpf ogt, %87, %88 : vector<16x8xf32>
    %cst_33 = arith.constant 3.000000e-01 : f32
    %90 = vector.broadcast %cst_33 : f32 to vector<16x8xf32>
    %91 = arith.mulf %90, %87 : vector<16x8xf32>
    %92 = arith.select %89, %87, %91 : vector<16x8xi1>, vector<16x8xf32>
    %c0_34 = arith.constant 0 : index
    %c0_35 = arith.constant 0 : index
    %c0_36 = arith.constant 0 : index
    %93 = vector.load %arg7[%c0_34, %c0_35, %c0_36] : memref<1x16x8xf32, #tpu.memory_space<vmem>>, vector<1x16x8xf32>
    %94 = vector.shape_cast %93 : vector<1x16x8xf32> to vector<16x8xf32>
    %95 = vector.shape_cast %92 : vector<16x8xf32> to vector<1x16x8xf32>
    tpu.vector_store %arg7[%c0_34, %c0_35, %c0_36], %95 {strides = array<i32>} : memref<1x16x8xf32, #tpu.memory_space<vmem>>, vector<1x16x8xf32>,
    return
  }
  func.func @transform_0(%arg0: i32) -> (i32, i32, i32) {
    %c0_i32 = arith.constant 0 : i32
    %c0_i32_0 = arith.constant 0 : i32
    %c0_i32_1 = arith.constant 0 : i32
    return %arg0, %c0_i32, %c0_i32_0 : i32, i32, i32
  }
  func.func @transform_1(%arg0: i32) -> (i32, i32) {
    %c0_i32 = arith.constant 0 : i32
    %c0_i32_0 = arith.constant 0 : i32
    %c0_i32_1 = arith.constant 0 : i32
    return %c0_i32, %c0_i32_0 : i32, i32
  }
  func.func @transform_2(%arg0: i32) -> (i32, i32) {
    %c0_i32 = arith.constant 0 : i32
    %c0_i32_0 = arith.constant 0 : i32
    %c0_i32_1 = arith.constant 0 : i32
    return %c0_i32, %c0_i32_0 : i32, i32
  }
  func.func @transform_3(%arg0: i32) -> (i32, i32) {
    %c0_i32 = arith.constant 0 : i32
    %c0_i32_0 = arith.constant 0 : i32
    %c0_i32_1 = arith.constant 0 : i32
    return %c0_i32, %c0_i32_0 : i32, i32
  }
  func.func @transform_4(%arg0: i32) -> (i32, i32) {
    %c0_i32 = arith.constant 0 : i32
    %c0_i32_0 = arith.constant 0 : i32
    %c0_i32_1 = arith.constant 0 : i32
    return %c0_i32, %c0_i32_0 : i32, i32
  }
  func.func @transform_5(%arg0: i32) -> (i32, i32) {
    %c0_i32 = arith.constant 0 : i32
    %c0_i32_0 = arith.constant 0 : i32
    %c0_i32_1 = arith.constant 0 : i32
    return %c0_i32, %c0_i32_0 : i32, i32
  }
  func.func @transform_6(%arg0: i32) -> (i32, i32, i32) {
    %c0_i32 = arith.constant 0 : i32
    %c0_i32_0 = arith.constant 0 : i32
    %c0_i32_1 = arith.constant 0 : i32
    return %arg0, %c0_i32, %c0_i32_0 : i32, i32, i32
  }
}

</mosaic_0001>

<llo_original>
// kernel: tpu_custom_call.1
$region0: #{tpu_custom_call.1}
  #allocation0 [shape = 'u32[]', space=smem, size = 0x4, offset = 0x4, fixed_abs, tag = 'smem constant byte address 0x4 - core index']
  #allocation1 [shape = 'u32[72,128]{1,0:T(1,128)}', space=vmem, size = 0x9000, scoped, tag = 'internal scratch']
  %s0 = inlined_call_operand.vmem [shape: f32[2,16,8], index: 0, kind: input, shape index: {}]
  %s1 = inlined_call_operand.vmem [shape: f32[8,32], index: 1, kind: input, shape index: {}]
  %s2 = inlined_call_operand.vmem [shape: f32[32,4], index: 2, kind: input, shape index: {}]
  %s3 = inlined_call_operand.vmem [shape: f32[32,8], index: 3, kind: input, shape index: {}]
  %s4 = inlined_call_operand.vmem [shape: f32[8,2], index: 4, kind: input, shape index: {}]
  %s5 = inlined_call_operand.vmem [shape: f32[16,16], index: 5, kind: input, shape index: {}]
  %s6 = inlined_call_operand.vmem [shape: f32[2,16,8], index: 6, kind: output, shape index: {}]
  %s7 = sld [smem:[#allocation0]]
  $region57: #{tpu_custom_call.1} parent=0
    _
  %s9 = ssub.s32 1, %s7
  %s10 = scalar_select 0, %s9, %s7
  loop: start=0, step=1, limit=4
  $region2: #{tpu_custom_call.1} parent=0 // loop_pre_header
    _
  $region3: #{tpu_custom_call.1} parent=0 // loop_header
    %s12 = sphi 0, %s16
    %p13 = scmp.ge.s32.totalorder %s12, 4
    %s22 = sphi 0, %s24
    %s25 = sphi 0, %s22
    %s26 = sphi 0, %s25
    %s42 = sphi 0, %s26
    %s46 = sphi 0, %s46
    %s48 = sphi 0, %s46
    %s49 = sphi 0, %s48
    %s63 = sphi 0, %s49
    %s67 = sphi 0, %s67
    %s69 = sphi 0, %s67
    %s70 = sphi 0, %s69
    %s84 = sphi 0, %s70
    %s88 = sphi 0, %s88
    %s90 = sphi 0, %s88
    %s91 = sphi 0, %s90
    %s105 = sphi 0, %s91
    %s109 = sphi 0, %s109
    %s111 = sphi 0, %s109
    %s112 = sphi 0, %s111
    %s126 = sphi 0, %s112
    %s130 = sphi 0, %s130
    %s132 = sphi 0, %s130
    %s133 = sphi 0, %s132
    %s147 = sphi 0, %s133
    %s153 = sphi 0, %s155
    %s156 = sphi 0, %s153
    %s157 = sphi 0, %s156
    %s173 = sphi 0, %s157
  $region4: #{tpu_custom_call.1} parent=0 // loop_header_branch
    %15 = sbr.rel (%p13) target = $region8
  $region5: #{tpu_custom_call.1} parent=0 // loop_body
    %s17 = ssub.s32 %s12, 1
    %s18 = ssub.s32 %s12, 2
    %s19 = sadd.s32 %s12, 1
    %s20 = ssub.s32 %s12, %s19
    %p21 = scmp.eq.s32.totalorder %s20, 0
    %s23 = sadd.s32 %s22, 1
    %s24 = scalar_select %p21, %s22, %s23
    %p27 = pneg %p21
    %p28 = scmp.eq.s32.totalorder %s12, 1
    %p29 = por %p27, %p28
    %p30 = scmp.ne.s32.totalorder %s22, %s25
    %p31 = scmp.eq.s32.totalorder %s12, 0
    %p32 = por %p30, %p31
    %p33 = scmp.ne.s32.totalorder %s22, %s25
    %p34 = scmp.eq.s32.totalorder %s17, 1
    %p35 = por %p33, %p34
    %p36 = scmp.ne.s32.totalorder %s25, %s26
    %p37 = scmp.eq.s32.totalorder %s17, 0
    %p38 = por %p36, %p37
    %p39 = scmp.ne.s32.totalorder %s25, %s26
    %p40 = scmp.eq.s32.totalorder %s18, 1
    %p41 = por %p39, %p40
    %p43 = scmp.ne.s32.totalorder %s26, %s42
    %p44 = scmp.eq.s32.totalorder %s18, 0
    %p45 = por %p43, %p44
    %s47 = sadd.s32 %s46, 1
    %p50 = scmp.eq.s32.totalorder %s12, 1
    %p51 = scmp.ne.s32.totalorder %s46, %s48
    %p52 = scmp.eq.s32.totalorder %s12, 0
    %p53 = por %p51, %p52
    %p54 = scmp.ne.s32.totalorder %s46, %s48
    %p55 = scmp.eq.s32.totalorder %s17, 1
    %p56 = por %p54, %p55
    %p57 = scmp.ne.s32.totalorder %s48, %s49
    %p58 = scmp.eq.s32.totalorder %s17, 0
    %p59 = por %p57, %p58
    %p60 = scmp.ne.s32.totalorder %s48, %s49
    %p61 = scmp.eq.s32.totalorder %s18, 1
    %p62 = por %p60, %p61
    %p64 = scmp.ne.s32.totalorder %s49, %s63
    %p65 = scmp.eq.s32.totalorder %s18, 0
    %p66 = por %p64, %p65
    %s68 = sadd.s32 %s67, 1
    %p71 = scmp.eq.s32.totalorder %s12, 1
    %p72 = scmp.ne.s32.totalorder %s67, %s69
    %p73 = scmp.eq.s32.totalorder %s12, 0
    %p74 = por %p72, %p73
    %p75 = scmp.ne.s32.totalorder %s67, %s69
    %p76 = scmp.eq.s32.totalorder %s17, 1
    %p77 = por %p75, %p76
    %p78 = scmp.ne.s32.totalorder %s69, %s70
    %p79 = scmp.eq.s32.totalorder %s17, 0
    %p80 = por %p78, %p79
    %p81 = scmp.ne.s32.totalorder %s69, %s70
    %p82 = scmp.eq.s32.totalorder %s18, 1
    %p83 = por %p81, %p82
    %p85 = scmp.ne.s32.totalorder %s70, %s84
    %p86 = scmp.eq.s32.totalorder %s18, 0
    %p87 = por %p85, %p86
    %s89 = sadd.s32 %s88, 1
    %p92 = scmp.eq.s32.totalorder %s12, 1
    %p93 = scmp.ne.s32.totalorder %s88, %s90
    %p94 = scmp.eq.s32.totalorder %s12, 0
    %p95 = por %p93, %p94
    %p96 = scmp.ne.s32.totalorder %s88, %s90
    %p97 = scmp.eq.s32.totalorder %s17, 1
    %p98 = por %p96, %p97
    %p99 = scmp.ne.s32.totalorder %s90, %s91
    %p100 = scmp.eq.s32.totalorder %s17, 0
    %p101 = por %p99, %p100
    %p102 = scmp.ne.s32.totalorder %s90, %s91
    %p103 = scmp.eq.s32.totalorder %s18, 1
    %p104 = por %p102, %p103
    %p106 = scmp.ne.s32.totalorder %s91, %s105
    %p107 = scmp.eq.s32.totalorder %s18, 0
    %p108 = por %p106, %p107
    %s110 = sadd.s32 %s109, 1
    %p113 = scmp.eq.s32.totalorder %s12, 1
    %p114 = scmp.ne.s32.totalorder %s109, %s111
    %p115 = scmp.eq.s32.totalorder %s12, 0
    %p116 = por %p114, %p115
    %p117 = scmp.ne.s32.totalorder %s109, %s111
    %p118 = scmp.eq.s32.totalorder %s17, 1
    %p119 = por %p117, %p118
    %p120 = scmp.ne.s32.totalorder %s111, %s112
    %p121 = scmp.eq.s32.totalorder %s17, 0
    %p122 = por %p120, %p121
    %p123 = scmp.ne.s32.totalorder %s111, %s112
    %p124 = scmp.eq.s32.totalorder %s18, 1
    %p125 = por %p123, %p124
    %p127 = scmp.ne.s32.totalorder %s112, %s126
    %p128 = scmp.eq.s32.totalorder %s18, 0
    %p129 = por %p127, %p128
    %s131 = sadd.s32 %s130, 1
    %p134 = scmp.eq.s32.totalorder %s12, 1
    %p135 = scmp.ne.s32.totalorder %s130, %s132
    %p136 = scmp.eq.s32.totalorder %s12, 0
    %p137 = por %p135, %p136
    %p138 = scmp.ne.s32.totalorder %s130, %s132
    %p139 = scmp.eq.s32.totalorder %s17, 1
    %p140 = por %p138, %p139
    %p141 = scmp.ne.s32.totalorder %s132, %s133
    %p142 = scmp.eq.s32.totalorder %s17, 0
    %p143 = por %p141, %p142
    %p144 = scmp.ne.s32.totalorder %s132, %s133
    %p145 = scmp.eq.s32.totalorder %s18, 1
    %p146 = por %p144, %p145
    %p148 = scmp.ne.s32.totalorder %s133, %s147
    %p149 = scmp.eq.s32.totalorder %s18, 0
    %p150 = por %p148, %p149
    %s151 = ssub.s32 %s12, %s19
    %p152 = scmp.eq.s32.totalorder %s151, 0
    %s154 = sadd.s32 %s153, 1
    %s155 = scalar_select %p152, %s153, %s154
    %p158 = pneg %p152
    %p159 = scmp.eq.s32.totalorder %s12, 1
    %p160 = por %p158, %p159
    %p161 = scmp.ne.s32.totalorder %s153, %s156
    %p162 = scmp.eq.s32.totalorder %s12, 0
    %p163 = por %p161, %p162
    %p164 = scmp.ne.s32.totalorder %s153, %s156
    %p165 = scmp.eq.s32.totalorder %s17, 1
    %p166 = por %p164, %p165
    %p167 = scmp.ne.s32.totalorder %s156, %s157
    %p168 = scmp.eq.s32.totalorder %s17, 0
    %p169 = por %p167, %p168
    %p170 = scmp.ne.s32.totalorder %s156, %s157
    %p171 = scmp.eq.s32.totalorder %s18, 1
    %p172 = por %p170, %p171
    %p174 = scmp.ne.s32.totalorder %s157, %s173
    %p175 = scmp.eq.s32.totalorder %s18, 0
    %p176 = por %p174, %p175
    %p177 = scmp.le.s32.totalorder 1, %s12
    %p178 = scmp.lt.s32.totalorder %s12, 3
    %p179 = pnand %p177, %p178
    %p180 = pneg %p179
    // Predicated region
    $region9: #{tpu_custom_call.1} parent=5 // pred_check
      _
    $region10: #{tpu_custom_call.1} parent=5 // pred_check_branch
      %182 = sbr.rel (%p179) target = $region12
    $region11: #{tpu_custom_call.1} parent=5 // pred_region
      %s183 = ssub.s32 %s12, 1
      // Predicated region
      $region13: #{tpu_custom_call.1} parent=11 // pred_check
        %p184 = pneg %p59
      $region14: #{tpu_custom_call.1} parent=11 // pred_check_branch
        %186 = sbr.rel (%p184) target = $region16
      $region15: #{tpu_custom_call.1} parent=11 // pred_region
        _
      $region16: #{tpu_custom_call.1} parent=11 // pred_fallthru
        _
      // Predicated region
      $region17: #{tpu_custom_call.1} parent=11 // pred_check
        %p187 = pneg %p80
      $region18: #{tpu_custom_call.1} parent=11 // pred_check_branch
        %189 = sbr.rel (%p187) target = $region20
      $region19: #{tpu_custom_call.1} parent=11 // pred_region
        _
      $region20: #{tpu_custom_call.1} parent=11 // pred_fallthru
        _
      // Predicated region
      $region21: #{tpu_custom_call.1} parent=11 // pred_check
        %p190 = pneg %p101
      $region22: #{tpu_custom_call.1} parent=11 // pred_check_branch
        %192 = sbr.rel (%p190) target = $region24
      $region23: #{tpu_custom_call.1} parent=11 // pred_region
        _
      $region24: #{tpu_custom_call.1} parent=11 // pred_fallthru
        _
      // Predicated region
      $region25: #{tpu_custom_call.1} parent=11 // pred_check
        %p193 = pneg %p122
      $region26: #{tpu_custom_call.1} parent=11 // pred_check_branch
        %195 = sbr.rel (%p193) target = $region28
      $region27: #{tpu_custom_call.1} parent=11 // pred_region
        _
      $region28: #{tpu_custom_call.1} parent=11 // pred_fallthru
        _
      // Predicated region
      $region29: #{tpu_custom_call.1} parent=11 // pred_check
        %p196 = pneg %p143
      $region30: #{tpu_custom_call.1} parent=11 // pred_check_branch
        %198 = sbr.rel (%p196) target = $region32
      $region31: #{tpu_custom_call.1} parent=11 // pred_region
        _
      $region32: #{tpu_custom_call.1} parent=11 // pred_fallthru
        _
    $region12: #{tpu_custom_call.1} parent=5 // pred_fallthru
      _
    %p199 = scmp.lt.s32.totalorder %s12, 2
    // Predicated region
    $region33: #{tpu_custom_call.1} parent=5 // pred_check
      %p200 = pneg %p199
    $region34: #{tpu_custom_call.1} parent=5 // pred_check_branch
      %202 = sbr.rel (%p200) target = $region36
    $region35: #{tpu_custom_call.1} parent=5 // pred_region
      // Predicated region
      $region37: #{tpu_custom_call.1} parent=35 // pred_check
        %p203 = pneg %p32
      $region38: #{tpu_custom_call.1} parent=35 // pred_check_branch
        %205 = sbr.rel (%p203) target = $region40
      $region39: #{tpu_custom_call.1} parent=35 // pred_region
        %p206 = scmp.lt.s32.totalorder %s12, 1
        %s207 = scalar_select %p206, %s12, 1
        %s208 = smul.addr %s207, 2
        %s209 = smul.addr %s208, 8
        %s210 = scalar_lea.vmem %s0, %s209
      $region40: #{tpu_custom_call.1} parent=35 // pred_fallthru
        _
    $region36: #{tpu_custom_call.1} parent=5 // pred_fallthru
      _
    %p211 = scmp.le.s32.totalorder 1, %s12
    %p212 = scmp.lt.s32.totalorder %s12, 3
    %p213 = pnand %p211, %p212
    %p214 = pneg %p213
    // Predicated region
    $region41: #{tpu_custom_call.1} parent=5 // pred_check
      _
    $region42: #{tpu_custom_call.1} parent=5 // pred_check_branch
      %216 = sbr.rel (%p213) target = $region44
    $region43: #{tpu_custom_call.1} parent=5 // pred_region
      %s217 = ssub.s32 %s12, 1
      %p218 = scmp.lt.s32.totalorder %s17, 1
      %s219 = scalar_select %p218, %s17, 1
      %s220 = smul.addr %s219, 2
      %s221 = smul.addr %s220, 8
      %s222 = scalar_lea.vmem %s0, %s221
      %p223 = pneg %p38
      %p224 = pneg %p35
      %p225 = pneg %p59
      %p226 = pneg %p56
      %p227 = pneg %p80
      %p228 = pneg %p77
      %p229 = pneg %p101
      %p230 = pneg %p98
      %p231 = pneg %p122
      %p232 = pneg %p119
      %p233 = pneg %p143
      %p234 = pneg %p140
      %p235 = pneg %p169
      %p236 = pneg %p166
      %p237 = scmp.lt.s32.totalorder %s17, 1
      %s238 = scalar_select %p237, %s17, 1
      %s239 = smul.addr %s238, 2
      %s240 = smul.addr %s239, 8
      %s241 = scalar_lea.vmem %s6, %s240
      %p242 = scmp.lt.s32.totalorder %s17, 1
      %s243 = scalar_select %p242, %s17, 1
      %s244 = smul.addr %s243, 2
      %s245 = smul.addr %s244, 8
      %s246 = scalar_lea.vmem %s0, %s245
      %p247 = scmp.lt.s32.totalorder %s17, 1
      %s248 = scalar_select %p247, %s17, 1
      %s249 = smul.addr %s248, 2
      %s250 = smul.addr %s249, 8
      %s251 = scalar_lea.vmem %s6, %s250
      %v252 = vld [vmem:[%s246] sm:$0xff]
      %v253 = vld [vmem:[%s246 + $0x8] sm:$0xff]
      %v254 = vld [vmem:[%s5] sm:$0xff]
      %v255 = vld [vmem:[%s5 + $0x8] sm:$0xff]
      %v256 = vld [vmem:[%s1] sm:$0xff]
      %vm257 = vcmask 64512
      %v259 = vsel %vm257, %v252, 0
      %v262 = vsel %vm257, %v253, 0
      %264 = vmatpush.msra.mxu0 0.0
      %265 = vmatpush.msra.mxu0 0.0
      %266 = vmatpush.msra.mxu0 0.0
      %267 = vmatpush.msra.mxu0 0.0
      %268 = vmatpush.msra.mxu0 0.0
      %269 = vmatpush.msra.mxu0 0.0
      %270 = vmatpush.msra.mxu0 0.0
      %271 = vmatpush.msra.mxu0 0.0
      %272 = vmatpush.msra.mxu0 0.0
      %273 = vmatpush.msra.mxu0 0.0
      %274 = vmatpush.msra.mxu0 0.0
      %275 = vmatpush.msra.mxu0 0.0
      %276 = vmatpush.msra.mxu0 0.0
      %277 = vmatpush.msra.mxu0 0.0
      %278 = vmatpush.msra.mxu0 0.0
      %279 = vmatpush.msra.mxu0 %v256
      %280 = vmatmul.f32.gmra.mxu0 %v259
      %v281 = vpop.f32.mrf.mxu0
      %v282 = vadd.f32 0.0, %v281
      %283 = vmatmul.f32.gmra.mxu0 %v262
      %v284 = vpop.f32.mrf.mxu0
      %v285 = vadd.f32 0.0, %v284
      %286 = vdwg.mxu0
      %v287 = vld [vmem:[%s2] sm:$0xff]
      %v288 = vld [vmem:[%s2 + $0x8] sm:$0xff]
      %v289 = vld [vmem:[%s2 + $0x10] sm:$0xff]
      %v290 = vld [vmem:[%s2 + $0x18] sm:$0xff]
      %vm291 = vcmask 261120
      %v293 = vsel %vm291, %v282, 0
      %v296 = vsel %vm291, %v285, 0
      %298 = vmatpush.msra.mxu0 0.0
      %299 = vmatpush.msra.mxu0 0.0
      %300 = vmatpush.msra.mxu0 0.0
      %301 = vmatpush.msra.mxu0 0.0
      %302 = vmatpush.msra.mxu0 0.0
      %303 = vmatpush.msra.mxu0 0.0
      %304 = vmatpush.msra.mxu0 0.0
      %305 = vmatpush.msra.mxu0 0.0
      %306 = vmatpush.msra.mxu0 0.0
      %307 = vmatpush.msra.mxu0 0.0
      %308 = vmatpush.msra.mxu0 0.0
      %309 = vmatpush.msra.mxu0 0.0
      %310 = vmatpush.msra.mxu0 %v290
      %311 = vmatpush.msra.mxu0 %v289
      %312 = vmatpush.msra.mxu0 %v288
      %313 = vmatpush.msra.mxu0 %v287
      %314 = vmatmul.f32.gmra.mxu0 %v293
      %v315 = vpop.f32.mrf.mxu0
      %v316 = vadd.f32 0.0, %v315
      %317 = vmatmul.f32.gmra.mxu0 %v296
      %v318 = vpop.f32.mrf.mxu0
      %v319 = vadd.f32 0.0, %v318
      %320 = vdwg.mxu0
      %323 = vrot.lane.b32.xlu0 %v316, 126
      %v324 = vpop.permute.xlu0 %323
      %325 = vrot.lane.b32.xlu0 %v319, 126
      %v326 = vpop.permute.xlu0 %325
      %329 = vxpose.xlu0.b32.start [1/16] %v324, 128
      %330 = vxpose.xlu0.b32.cont [2/16] %v326, 128
      %331 = vxpose.xlu0.b32.cont [3/16] 0.0, 128
      %332 = vxpose.xlu0.b32.cont [4/16] 0.0, 128
      %333 = vxpose.xlu0.b32.cont [5/16] 0.0, 128
      %334 = vxpose.xlu0.b32.cont [6/16] 0.0, 128
      %335 = vxpose.xlu0.b32.cont [7/16] 0.0, 128
      %336 = vxpose.xlu0.b32.cont [8/16] 0.0, 128
      %337 = vxpose.xlu0.b32.cont [9/16] 0.0, 128
      %338 = vxpose.xlu0.b32.cont [10/16] 0.0, 128
      %339 = vxpose.xlu0.b32.cont [11/16] 0.0, 128
      %340 = vxpose.xlu0.b32.cont [12/16] 0.0, 128
      %341 = vxpose.xlu0.b32.cont [13/16] 0.0, 128
      %342 = vxpose.xlu0.b32.cont [14/16] 0.0, 128
      %343 = vxpose.xlu0.b32.cont [15/16] 0.0, 128
      %344 = vxpose.xlu0.b32.end [16/16] 0.0, 128
      %v345 = vpop.trf.xlu0
      %v346 = vpop.trf.xlu0
      %v347 = vpop.trf.xlu0
      %v348 = vpop.trf.xlu0
      %v349 = vpop.trf.xlu0
      %v350 = vpop.trf.xlu0
      %v351 = vpop.trf.xlu0
      %v352 = vpop.trf.xlu0
      %v353 = vpop.trf.xlu0
      %v354 = vpop.trf.xlu0
      %v355 = vpop.trf.xlu0
      %v356 = vpop.trf.xlu0
      %v357 = vpop.trf.xlu0
      %v358 = vpop.trf.xlu0
      %v359 = vpop.trf.xlu0
      %v360 = vpop.trf.xlu0
      %361 = vset.pattern.permute.xlu0 0
      %362 = vperm.xlu0 %361, %v316
      %v363 = vpop.permute.xlu0 %362
      %365 = vset.pattern.permute.xlu0 0
      %366 = vperm.xlu0 %365, %v319
      %v367 = vpop.permute.xlu0 %366
      %v369 = vperm.slane %v345, 0
      %v370 = vadd.f32 %v363, %v369
      %v371 = vadd.f32 %v367, %v369
      %vm372 = vcmp.gt.f32.partialorder %v370, 0.0
      %vm373 = vcmp.gt.f32.partialorder %v371, 0.0
      %v374 = vmul.f32 %v370, 0.2
      %v375 = vmul.f32 %v371, 0.2
      %v376 = vsel %vm372, %v370, %v374
      %v377 = vsel %vm373, %v371, %v375
      %v378 = vadd.f32 %v376, %v254
      %v379 = vadd.f32 %v377, %v255
      %vm380 = vcmask 130048
      %v381 = vsel %vm380, %v378, -inf
      %382 = vmax.xlane.f32.xlu0 %v381
      %v383 = vpop.xlane.xlu0 %382
      %v384 = vsel %vm380, %v379, -inf
      %385 = vmax.xlane.f32.xlu0 %v384
      %v386 = vpop.xlane.xlu0 %385
      %v387 = vsub.f32 %v378, %v383
      %v388 = vsub.f32 %v379, %v386
      %v389 = vmul.f32 %v387, 1.442695
      %v390 = vpow.pop %v389
      %v391 = vmul.f32 %v388, 1.442695
      %v392 = vpow.pop %v391
      %v393 = vsel %vm380, %v390, 0.0
      %394 = vadd.xlane.f32.xlu0 %v393
      %v395 = vpop.xlane.xlu0 %394
      %v396 = vsel %vm380, %v392, 0.0
      %397 = vadd.xlane.f32.xlu0 %v396
      %v398 = vpop.xlane.xlu0 %397
      %v399 = vrcp.pop %v395
      %v400 = vrcp.pop %v398
      %v401 = vmul.f32 %v390, %v399
      %v402 = vmul.f32 %v392, %v400
      %v404 = vsel %vm380, %v401, 0
      %v407 = vsel %vm380, %v402, 0
      %409 = vmatpush.msra.mxu0 0.0
      %410 = vmatpush.msra.mxu0 0.0
      %411 = vmatpush.msra.mxu0 0.0
      %412 = vmatpush.msra.mxu0 0.0
      %413 = vmatpush.msra.mxu0 0.0
      %414 = vmatpush.msra.mxu0 0.0
      %415 = vmatpush.msra.mxu0 0.0
      %416 = vmatpush.msra.mxu0 0.0
      %417 = vmatpush.msra.mxu0 0.0
      %418 = vmatpush.msra.mxu0 0.0
      %419 = vmatpush.msra.mxu0 0.0
      %420 = vmatpush.msra.mxu0 0.0
      %421 = vmatpush.msra.mxu0 0.0
      %422 = vmatpush.msra.mxu0 0.0
      %423 = vmatpush.msra.mxu0 %v285
      %424 = vmatpush.msra.mxu0 %v282
      %425 = vmatmul.f32.gmra.mxu0 %v404
      %v426 = vpop.f32.mrf.mxu0
      %v427 = vadd.f32 0.0, %v426
      %428 = vmatmul.f32.gmra.mxu0 %v407
      %v429 = vpop.f32.mrf.mxu0
      %v430 = vadd.f32 0.0, %v429
      %431 = vdwg.mxu0
      %432 = vset.pattern.permute.xlu0 1
      %433 = vperm.xlu0 %432, %v316
      %v434 = vpop.permute.xlu0 %433
      %436 = vset.pattern.permute.xlu0 1
      %437 = vperm.xlu0 %436, %v319
      %v438 = vpop.permute.xlu0 %437
      %v440 = vperm.slane %v345, 1
      %v441 = vadd.f32 %v434, %v440
      %v442 = vadd.f32 %v438, %v440
      %vm443 = vcmp.gt.f32.partialorder %v441, 0.0
      %vm444 = vcmp.gt.f32.partialorder %v442, 0.0
      %v445 = vmul.f32 %v441, 0.2
      %v446 = vmul.f32 %v442, 0.2
      %v447 = vsel %vm443, %v441, %v445
      %v448 = vsel %vm444, %v442, %v446
      %v449 = vadd.f32 %v447, %v254
      %v450 = vadd.f32 %v448, %v255
      %v451 = vsel %vm380, %v449, -inf
      %452 = vmax.xlane.f32.xlu0 %v451
      %v453 = vpop.xlane.xlu0 %452
      %v454 = vsel %vm380, %v450, -inf
      %455 = vmax.xlane.f32.xlu0 %v454
      %v456 = vpop.xlane.xlu0 %455
      %v457 = vsub.f32 %v449, %v453
      %v458 = vsub.f32 %v450, %v456
      %v459 = vmul.f32 %v457, 1.442695
      %v460 = vpow.pop %v459
      %v461 = vmul.f32 %v458, 1.442695
      %v462 = vpow.pop %v461
      %v463 = vsel %vm380, %v460, 0.0
      %464 = vadd.xlane.f32.xlu0 %v463
      %v465 = vpop.xlane.xlu0 %464
      %v466 = vsel %vm380, %v462, 0.0
      %467 = vadd.xlane.f32.xlu0 %v466
      %v468 = vpop.xlane.xlu0 %467
      %v469 = vrcp.pop %v465
      %v470 = vrcp.pop %v468
      %v471 = vmul.f32 %v460, %v469
      %v472 = vmul.f32 %v462, %v470
      %473 = vrot.lane.b32.xlu0 %v282, 112
      %v474 = vpop.permute.xlu0 %473
      %475 = vrot.lane.b32.xlu0 %v285, 112
      %v476 = vpop.permute.xlu0 %475
      %v480 = vsel %vm380, %v471, 0
      %v483 = vsel %vm380, %v472, 0
      %485 = vmatpush.msra.mxu0 0.0
      %486 = vmatpush.msra.mxu0 0.0
      %487 = vmatpush.msra.mxu0 0.0
      %488 = vmatpush.msra.mxu0 0.0
      %489 = vmatpush.msra.mxu0 0.0
      %490 = vmatpush.msra.mxu0 0.0
      %491 = vmatpush.msra.mxu0 0.0
      %492 = vmatpush.msra.mxu0 0.0
      %493 = vmatpush.msra.mxu0 0.0
      %494 = vmatpush.msra.mxu0 0.0
      %495 = vmatpush.msra.mxu0 0.0
      %496 = vmatpush.msra.mxu0 0.0
      %497 = vmatpush.msra.mxu0 0.0
      %498 = vmatpush.msra.mxu0 0.0
      %499 = vmatpush.msra.mxu0 %v476
      %500 = vmatpush.msra.mxu0 %v474
      %501 = vmatmul.f32.gmra.mxu0 %v480
      %v502 = vpop.f32.mrf.mxu0
      %v503 = vadd.f32 0.0, %v502
      %504 = vmatmul.f32.gmra.mxu0 %v483
      %v505 = vpop.f32.mrf.mxu0
      %v506 = vadd.f32 0.0, %v505
      %507 = vdwg.mxu0
      %510 = vrot.lane.b32.xlu0 %v503, 16
      %v511 = vpop.permute.xlu0 %510
      %512 = vrot.lane.b32.xlu0 %v506, 16
      %v513 = vpop.permute.xlu0 %512
      %v516 = vsel %vm380, %v427, %v511
      %v517 = vsel %vm380, %v430, %v513
      %vm518 = vcmp.gt.f32.partialorder %v516, 0.0
      %vm519 = vcmp.gt.f32.partialorder %v517, 0.0
      %v520 = vmul.f32 %v516, 0.3
      %v521 = vmul.f32 %v517, 0.3
      %v522 = vsel %vm518, %v516, %v520
      %v523 = vsel %vm519, %v517, %v521
      %v524 = vld [vmem:[%s3] sm:$0xff]
      %v525 = vld [vmem:[%s3 + $0x8] sm:$0xff]
      %v526 = vld [vmem:[%s3 + $0x10] sm:$0xff]
      %v527 = vld [vmem:[%s3 + $0x18] sm:$0xff]
      %v529 = vsel %vm291, %v522, 0
      %v532 = vsel %vm291, %v523, 0
      %534 = vmatpush.msra.mxu0 0.0
      %535 = vmatpush.msra.mxu0 0.0
      %536 = vmatpush.msra.mxu0 0.0
      %537 = vmatpush.msra.mxu0 0.0
      %538 = vmatpush.msra.mxu0 0.0
      %539 = vmatpush.msra.mxu0 0.0
      %540 = vmatpush.msra.mxu0 0.0
      %541 = vmatpush.msra.mxu0 0.0
      %542 = vmatpush.msra.mxu0 0.0
      %543 = vmatpush.msra.mxu0 0.0
      %544 = vmatpush.msra.mxu0 0.0
      %545 = vmatpush.msra.mxu0 0.0
      %546 = vmatpush.msra.mxu0 %v527
      %547 = vmatpush.msra.mxu0 %v526
      %548 = vmatpush.msra.mxu0 %v525
      %549 = vmatpush.msra.mxu0 %v524
      %550 = vmatmul.f32.gmra.mxu0 %v529
      %v551 = vpop.f32.mrf.mxu0
      %v552 = vadd.f32 0.0, %v551
      %553 = vmatmul.f32.gmra.mxu0 %v532
      %v554 = vpop.f32.mrf.mxu0
      %v555 = vadd.f32 0.0, %v554
      %556 = vdwg.mxu0
      %v557 = vld [vmem:[%s4] sm:$0xff]
      %v559 = vsel %vm257, %v552, 0
      %v562 = vsel %vm257, %v555, 0
      %564 = vmatpush.msra.mxu0 0.0
      %565 = vmatpush.msra.mxu0 0.0
      %566 = vmatpush.msra.mxu0 0.0
      %567 = vmatpush.msra.mxu0 0.0
      %568 = vmatpush.msra.mxu0 0.0
      %569 = vmatpush.msra.mxu0 0.0
      %570 = vmatpush.msra.mxu0 0.0
      %571 = vmatpush.msra.mxu0 0.0
      %572 = vmatpush.msra.mxu0 0.0
      %573 = vmatpush.msra.mxu0 0.0
      %574 = vmatpush.msra.mxu0 0.0
      %575 = vmatpush.msra.mxu0 0.0
      %576 = vmatpush.msra.mxu0 0.0
      %577 = vmatpush.msra.mxu0 0.0
      %578 = vmatpush.msra.mxu0 0.0
      %579 = vmatpush.msra.mxu0 %v557
      %580 = vmatmul.f32.gmra.mxu0 %v559
      %v581 = vpop.f32.mrf.mxu0
      %v582 = vadd.f32 0.0, %v581
      %583 = vmatmul.f32.gmra.mxu0 %v562
      %v584 = vpop.f32.mrf.mxu0
      %v585 = vadd.f32 0.0, %v584
      %586 = vdwg.mxu0
      %589 = vrot.lane.b32.xlu0 %v582, 127
      %v590 = vpop.permute.xlu0 %589
      %591 = vrot.lane.b32.xlu0 %v585, 127
      %v592 = vpop.permute.xlu0 %591
      %595 = vxpose.xlu0.b32.start [1/16] %v590, 128
      %596 = vxpose.xlu0.b32.cont [2/16] %v592, 128
      %597 = vxpose.xlu0.b32.cont [3/16] 0.0, 128
      %598 = vxpose.xlu0.b32.cont [4/16] 0.0, 128
      %599 = vxpose.xlu0.b32.cont [5/16] 0.0, 128
      %600 = vxpose.xlu0.b32.cont [6/16] 0.0, 128
      %601 = vxpose.xlu0.b32.cont [7/16] 0.0, 128
      %602 = vxpose.xlu0.b32.cont [8/16] 0.0, 128
      %603 = vxpose.xlu0.b32.cont [9/16] 0.0, 128
      %604 = vxpose.xlu0.b32.cont [10/16] 0.0, 128
      %605 = vxpose.xlu0.b32.cont [11/16] 0.0, 128
      %606 = vxpose.xlu0.b32.cont [12/16] 0.0, 128
      %607 = vxpose.xlu0.b32.cont [13/16] 0.0, 128
      %608 = vxpose.xlu0.b32.cont [14/16] 0.0, 128
      %609 = vxpose.xlu0.b32.cont [15/16] 0.0, 128
      %610 = vxpose.xlu0.b32.end [16/16] 0.0, 128
      %v611 = vpop.trf.xlu0
      %v612 = vpop.trf.xlu0
      %v613 = vpop.trf.xlu0
      %v614 = vpop.trf.xlu0
      %v615 = vpop.trf.xlu0
      %v616 = vpop.trf.xlu0
      %v617 = vpop.trf.xlu0
      %v618 = vpop.trf.xlu0
      %v619 = vpop.trf.xlu0
      %v620 = vpop.trf.xlu0
      %v621 = vpop.trf.xlu0
      %v622 = vpop.trf.xlu0
      %v623 = vpop.trf.xlu0
      %v624 = vpop.trf.xlu0
      %v625 = vpop.trf.xlu0
      %v626 = vpop.trf.xlu0
      %627 = vset.pattern.permute.xlu0 0
      %628 = vperm.xlu0 %627, %v582
      %v629 = vpop.permute.xlu0 %628
      %631 = vset.pattern.permute.xlu0 0
      %632 = vperm.xlu0 %631, %v585
      %v633 = vpop.permute.xlu0 %632
      %v635 = vperm.slane %v611, 0
      %v636 = vadd.f32 %v629, %v635
      %v637 = vadd.f32 %v633, %v635
      %vm638 = vcmp.gt.f32.partialorder %v636, 0.0
      %vm639 = vcmp.gt.f32.partialorder %v637, 0.0
      %v640 = vmul.f32 %v636, 0.2
      %v641 = vmul.f32 %v637, 0.2
      %v642 = vsel %vm638, %v636, %v640
      %v643 = vsel %vm639, %v637, %v641
      %v644 = vadd.f32 %v642, %v254
      %v645 = vadd.f32 %v643, %v255
      %v646 = vsel %vm380, %v644, -inf
      %647 = vmax.xlane.f32.xlu0 %v646
      %v648 = vpop.xlane.xlu0 %647
      %v649 = vsel %vm380, %v645, -inf
      %650 = vmax.xlane.f32.xlu0 %v649
      %v651 = vpop.xlane.xlu0 %650
      %v652 = vsub.f32 %v644, %v648
      %v653 = vsub.f32 %v645, %v651
      %v654 = vmul.f32 %v652, 1.442695
      %v655 = vpow.pop %v654
      %v656 = vmul.f32 %v653, 1.442695
      %v657 = vpow.pop %v656
      %v658 = vsel %vm380, %v655, 0.0
      %659 = vadd.xlane.f32.xlu0 %v658
      %v660 = vpop.xlane.xlu0 %659
      %v661 = vsel %vm380, %v657, 0.0
      %662 = vadd.xlane.f32.xlu0 %v661
      %v663 = vpop.xlane.xlu0 %662
      %v664 = vrcp.pop %v660
      %v665 = vrcp.pop %v663
      %v666 = vmul.f32 %v655, %v664
      %v667 = vmul.f32 %v657, %v665
      %v669 = vsel %vm380, %v666, 0
      %v672 = vsel %vm380, %v667, 0
      %674 = vmatpush.msra.mxu0 0.0
      %675 = vmatpush.msra.mxu0 0.0
      %676 = vmatpush.msra.mxu0 0.0
      %677 = vmatpush.msra.mxu0 0.0
      %678 = vmatpush.msra.mxu0 0.0
      %679 = vmatpush.msra.mxu0 0.0
      %680 = vmatpush.msra.mxu0 0.0
      %681 = vmatpush.msra.mxu0 0.0
      %682 = vmatpush.msra.mxu0 0.0
      %683 = vmatpush.msra.mxu0 0.0
      %684 = vmatpush.msra.mxu0 0.0
      %685 = vmatpush.msra.mxu0 0.0
      %686 = vmatpush.msra.mxu0 0.0
      %687 = vmatpush.msra.mxu0 0.0
      %688 = vmatpush.msra.mxu0 %v555
      %689 = vmatpush.msra.mxu0 %v552
      %690 = vmatmul.f32.gmra.mxu0 %v669
      %v691 = vpop.f32.mrf.mxu0
      %v692 = vadd.f32 0.0, %v691
      %693 = vmatmul.f32.gmra.mxu0 %v672
      %v694 = vpop.f32.mrf.mxu0
      %v695 = vadd.f32 0.0, %v694
      %696 = vdwg.mxu0
      %vm697 = vcmp.gt.f32.partialorder %v692, 0.0
      %vm698 = vcmp.gt.f32.partialorder %v695, 0.0
      %v699 = vmul.f32 %v692, 0.3
      %v700 = vmul.f32 %v695, 0.3
      %v701 = vsel %vm697, %v692, %v699
      %v702 = vsel %vm698, %v695, %v700
      %703 = vst.msk [vmem:[%s251] sm:$0xff] %vm257, %v701
      %704 = vst.msk [vmem:[%s251 + $0x8] sm:$0xff] %vm257, %v702
      %p705 = scmp.lt.s32.totalorder %s17, 1
      %s706 = scalar_select %p705, %s17, 1
      %s707 = smul.addr %s706, 2
      %s708 = smul.addr %s707, 8
      %s709 = scalar_lea.vmem %s6, %s708
      // Predicated region
      $region45: #{tpu_custom_call.1} parent=43 // pred_check
        %p710 = pneg %p166
      $region46: #{tpu_custom_call.1} parent=43 // pred_check_branch
        %712 = sbr.rel (%p710) target = $region48
      $region47: #{tpu_custom_call.1} parent=43 // pred_region
        _
      $region48: #{tpu_custom_call.1} parent=43 // pred_fallthru
        _
    $region44: #{tpu_custom_call.1} parent=5 // pred_fallthru
      _
    %p713 = scmp.le.s32.totalorder 2, %s12
    // Predicated region
    $region49: #{tpu_custom_call.1} parent=5 // pred_check
      %p714 = pneg %p713
    $region50: #{tpu_custom_call.1} parent=5 // pred_check_branch
      %716 = sbr.rel (%p714) target = $region52
    $region51: #{tpu_custom_call.1} parent=5 // pred_region
      %s717 = ssub.s32 %s12, 2
      // Predicated region
      $region53: #{tpu_custom_call.1} parent=51 // pred_check
        %p718 = pneg %p172
      $region54: #{tpu_custom_call.1} parent=51 // pred_check_branch
        %720 = sbr.rel (%p718) target = $region56
      $region55: #{tpu_custom_call.1} parent=51 // pred_region
        %p721 = scmp.lt.s32.totalorder %s18, 1
        %s722 = scalar_select %p721, %s18, 1
        %s723 = smul.addr %s722, 2
        %s724 = smul.addr %s723, 8
        %s725 = scalar_lea.vmem %s6, %s724
      $region56: #{tpu_custom_call.1} parent=51 // pred_fallthru
        _
    $region52: #{tpu_custom_call.1} parent=5 // pred_fallthru
      _
  $region6: #{tpu_custom_call.1} parent=0 // loop_footer
    %s16 = sadd.s32 1, %s12
  $region7: #{tpu_custom_call.1} parent=0 // loop_footer_branch
    %11 = sbr.rel target = $region3
  $region8: #{tpu_custom_call.1} parent=0 // loop_exit
    _

</llo_original>
